<compile_context>
chip_gen: v6e
topology: v6e:2x2x1
jax: 0.10.0
libtpu: 0.0.40
codegen_flags: <defaults>
</compile_context>

<pallas_src>
import numpy as np
import jax
import jax.numpy as jnp
from jax.experimental import pallas as pl
from jax.experimental.pallas import tpu as pltpu

LN_EPS = 1e-5


def _round_up(x, m):
    return ((x + m - 1) // m) * m


def _interleave_order(u_num, v_num):
    """Row-gather order producing the per-graph interleaved output from the
    stacked [u_ctx; v_ctx] tensor.  u_num / v_num are host arrays (the PyTorch
    forward does .cpu().numpy() and loops in python), so this permutation is
    static at trace time."""
    u_num = np.asarray(u_num)
    v_num = np.asarray(v_num)
    n_u = int(u_num.sum())
    order, u_idx, v_idx = [], 0, 0
    for g in range(len(u_num)):
        ul, vl = int(u_num[g]), int(v_num[g])
        order.extend(range(u_idx, u_idx + ul)); u_idx += ul
        order.extend(range(n_u + v_idx, n_u + v_idx + vl)); v_idx += vl
    return np.asarray(order, dtype=np.int32)


# ---------------------------------------------------------------------------
# Fused per-tile kernel:
#   user path : multi-hot row-select @ (lin_w-folded) fused table  -> [TM, D]
#   item path : v_features @ item_emb, then LayerNorm (f32, two-pass moments)
#   output    : user|item packed side-by-side into one [TM, 2*D] slab
# ---------------------------------------------------------------------------
def _make_fused_kernel(num_feature, tm, d):
    def kernel(uidx_ref, vfeat_ref, ftab_ref, emb_ref, gamma_ref, beta_ref, o_ref):
        ftab = ftab_ref[...]                               # [T_pad, D] resident
        t_pad = ftab.shape[0]

        # ---- UserContext: multi-hot gather + (folded) Linear -----------------
        # Indices are pre-offset into the fused table, so the F per-feature
        # one-hots occupy disjoint column ranges; their sum is a 0/1 multi-hot
        # and a single matmul realizes  sum_f table_f[idx_f] @ W_f.
        # Note: like the previous version, an out-of-range index silently selects
        # no row (zero embedding) instead of raising like nn.Embedding.
        uidx = uidx_ref[...]                               # [TM, F] int32
        iota = jax.lax.broadcasted_iota(jnp.int32, (tm, t_pad), 1)
        multi_hot = None
        for f in range(num_feature):
            oh = (iota == uidx[:, f:f + 1]).astype(ftab.dtype)   # built in MXU dtype
            multi_hot = oh if multi_hot is None else multi_hot + oh
        u_tile = jnp.dot(multi_hot, ftab, preferred_element_type=jnp.float32)

        # ---- ItemContext: matmul + LayerNorm (two-pass moments, f32) ---------
        h = jnp.dot(vfeat_ref[...], emb_ref[...],
                    preferred_element_type=jnp.float32)    # [TM, D] f32
        inv_d = 1.0 / h.shape[-1]
        mean = jnp.sum(h, axis=-1, keepdims=True) * inv_d
        cen = h - mean
        var = jnp.sum(cen * cen, axis=-1, keepdims=True) * inv_d
        v_tile = cen * jax.lax.rsqrt(var + LN_EPS) * gamma_ref[...] + beta_ref[...]

        # ---- pack user | item side-by-side into one output slab --------------
        # TODO(synk): pack 4 logical D=32 rows per 128-lane output row (or drive
        # the per-graph interleave via a scalar-prefetched output index_map) to
        # make the store path fully lane-dense at production sizes.
        o_ref[:, :d] = u_tile.astype(o_ref.dtype)
        o_ref[:, d:2 * d] = v_tile.astype(o_ref.dtype)

    return kernel


def node_context_forward(params, u_features, v_features, u_num, v_num,
                         *, compute_dtype=jnp.float32, tm=256):
    """NodeContext forward.  compute_dtype=jnp.bfloat16 casts only the MXU
    operands (good on v6e/v7x; keep f32 on v5e — no bf16 VPU there); LayerNorm
    math and accumulation stay f32."""
    tables = params["user_tables"]
    lin_w = params["lin_w"]
    item_emb = params["item_emb"].astype(compute_dtype)
    gamma, beta = params["ln_gamma"], params["ln_beta"]
    v_in = v_features.astype(compute_dtype)

    num_feature = len(tables)
    n_u, nf = u_features.shape
    assert nf == num_feature
    n_v, e = v_in.shape
    d = item_emb.shape[1]

    # ---- fold Linear(bias=False) into the embedding tables --------------------
    # fused_table = concat_f(table_f @ W_f)  => user path is one matmul.
    # TODO(synk): for production-sized tables, skip the one-hot path and gather
    # rows from HBM via scalar-prefetched indices (memory_space=pl.ANY + DMA).
    fused = jnp.concatenate(
        [jnp.matmul(tables[f].astype(jnp.float32),
                    lin_w[f * d:(f + 1) * d, :].astype(jnp.float32),
                    precision=jax.lax.Precision.HIGHEST)
         for f in range(num_feature)], axis=0)
    sizes = [int(t.shape[0]) for t in tables]
    t_total = int(sum(sizes))
    t_pad = _round_up(t_total, 8)
    fused = jnp.pad(fused, ((0, t_pad - t_total), (0, 0))).astype(compute_dtype)

    offsets = np.concatenate([[0], np.cumsum(sizes)[:-1]]).astype(np.int32)
    uidx = u_features.astype(jnp.int32) + jnp.asarray(offsets)[None, :]  # [N_u, F]

    # ---- row tiling: both paths padded to the same n_tiles * TM rows ----------
    max_rows = max(n_u, n_v, 1)
    tm_eff = _round_up(max(8, min(int(tm), _round_up(max_rows, 8))), 8)
    n_tiles = -(-max_rows // tm_eff)
    n_pad = n_tiles * tm_eff

    uidx_pad = jnp.pad(uidx, ((0, n_pad - n_u), (0, 0)))     # pad rows -> index 0
    v_pad = jnp.pad(v_in, ((0, n_pad - n_v), (0, 0)))        # pad rows -> zeros

    kernel = _make_fused_kernel(num_feature, tm_eff, d)

    def resident(shape):  # whole-array block, kept in VMEM across grid steps
        return pl.BlockSpec(shape, lambda i: (0, 0))

    in_specs = [
        pl.BlockSpec((tm_eff, num_feature), lambda i: (i, 0)),   # offset indices
        pl.BlockSpec((tm_eff, e), lambda i: (i, 0)),             # item features
        resident((t_pad, d)),                                    # fused user table
        resident((e, d)),                                        # item embedding
        resident((1, d)), resident((1, d)),                      # LN gamma / beta
    ]
    out_spec = pl.BlockSpec((tm_eff, 2 * d), lambda i: (i, 0))

    # Per-generation VMEM budget (v5e/v6e 128 MiB phys -> 64 MiB; v7x 64 -> 32).
    try:
        vmem_cap = int(pltpu.get_tpu_info().vmem_capacity_bytes)
    except Exception:
        vmem_cap = 128 * 1024 * 1024
    vmem_limit = int(min(vmem_cap // 2, 96 * 1024 * 1024))

    itemsize = jnp.dtype(compute_dtype).itemsize
    flops = 2 * n_pad * t_pad * d + 2 * n_pad * e * d + 8 * n_pad * d
    bytes_accessed = (n_pad * num_feature * 4 + n_pad * e * itemsize
                      + t_pad * d * itemsize + e * d * itemsize
                      + 2 * d * 4 + n_pad * 2 * d * 4)

    packed = pl.pallas_call(
        kernel,
        out_shape=jax.ShapeDtypeStruct((n_pad, 2 * d), jnp.float32),
        grid=(n_tiles,),
        in_specs=in_specs,
        out_specs=out_spec,
        compiler_params=pltpu.CompilerParams(
            dimension_semantics=("parallel",),       # shards across v7x's 2 TCs
            vmem_limit_bytes=vmem_limit),
        cost_estimate=pl.CostEstimate(
            flops=int(flops), transcendentals=int(n_pad),
            bytes_accessed=int(bytes_accessed)),
    )(uidx_pad, v_pad, fused, item_emb, gamma, beta)

    # ---- per-graph interleave: static row gather (trace-time permutation) -----
    u_ctx = packed[:n_u, :d]
    v_ctx = packed[:n_v, d:]
    order = _interleave_order(u_num, v_num)
    stacked = jnp.concatenate([u_ctx, v_ctx], axis=0)
    return jnp.take(stacked, jnp.asarray(order), axis=0)


# ---------------------------------------------------------------------------
# NodeContext parameters (matching the PyTorch init semantics)
# ---------------------------------------------------------------------------
def init_params(key, embedding_dim, item_num_embeddings, user_num_embeddings):
    keys = jax.random.split(key, 2 + len(user_num_embeddings))
    fan_in, fan_out = item_num_embeddings, embedding_dim
    std = float(np.sqrt(2.0 / (fan_in + fan_out)))
    item_emb = std * jax.random.normal(
        keys[0], (item_num_embeddings, embedding_dim), jnp.float32)
    ln_gamma = jnp.ones((1, embedding_dim), jnp.float32)
    ln_beta = jnp.zeros((1, embedding_dim), jnp.float32)
    user_tables = [
        jax.random.normal(keys[1 + i], (n, embedding_dim), jnp.float32)
        for i, n in enumerate(user_num_embeddings)
    ]
    f = len(user_num_embeddings)
    bound = float(1.0 / np.sqrt(f * embedding_dim))
    lin_w = jax.random.uniform(
        keys[-1], (f * embedding_dim, embedding_dim), jnp.float32,
        minval=-bound, maxval=bound)
    return dict(item_emb=item_emb, ln_gamma=ln_gamma, ln_beta=ln_beta,
                user_tables=user_tables, lin_w=lin_w)


# ---------------------------------------------------------------------------
# Pure-JAX reference (correctness check)
# ---------------------------------------------------------------------------
def node_context_reference(params, u_features, v_features, u_num, v_num):
    gathered = [jnp.take(tbl, u_features[:, i], axis=0)
                for i, tbl in enumerate(params["user_tables"])]
    u_context = jnp.concatenate(gathered, axis=1) @ params["lin_w"]
    h = v_features.astype(jnp.float32) @ params["item_emb"]
    mean = jnp.mean(h, axis=-1, keepdims=True)
    var = jnp.mean((h - mean) ** 2, axis=-1, keepdims=True)
    v_context = (h - mean) / jnp.sqrt(var + LN_EPS) * params["ln_gamma"] \
        + params["ln_beta"]
    stacked = jnp.concatenate([u_context, v_context], axis=0)
    order = _interleave_order(u_num, v_num)
    return jnp.take(stacked, jnp.asarray(order), axis=0)


if __name__ == "__main__":
    key = jax.random.PRNGKey(0)
    embedding_dim = 32
    item_num_embeddings = 64
    user_num_embeddings = [8, 16, 4]

    # two graphs in the batch
    u_num = np.array([5, 7], dtype=np.int32)   # N_u = 12 user nodes
    v_num = np.array([4, 6], dtype=np.int32)   # N_v = 10 item nodes
    n_u, n_v = int(u_num.sum()), int(v_num.sum())

    k_params, k_u, k_v = jax.random.split(key, 3)
    params = init_params(k_params, embedding_dim, item_num_embeddings,
                         user_num_embeddings)

    maxes = jnp.asarray(user_num_embeddings, dtype=jnp.int32)
    u_features = (jax.random.randint(k_u, (n_u, len(user_num_embeddings)),
                                     0, 10_000, dtype=jnp.int32) % maxes)
    v_features = jax.random.normal(k_v, (n_v, item_num_embeddings), jnp.float32)

    ref = np.asarray(jax.block_until_ready(
        node_context_reference(params, u_features, v_features, u_num, v_num)))

    # f32 path (tm=8 so the toy problem exercises a 2-step parallel grid).
    out = node_context_forward(params, u_features, v_features, u_num, v_num,
                               tm=8)
    out = np.asarray(jax.block_until_ready(out))
    assert out.shape == (n_u + n_v, embedding_dim)
    np.testing.assert_allclose(out, ref, rtol=1e-5, atol=1e-5)

    # bf16 MXU-operand path (v6e/v7x): LN / accumulation stay f32, so the looser
    # tolerance only reflects bf16 rounding of the matmul operands.
    out_bf16 = node_context_forward(params, u_features, v_features, u_num, v_num,
                                    compute_dtype=jnp.bfloat16, tm=8)
    out_bf16 = np.asarray(jax.block_until_ready(out_bf16))
    np.testing.assert_allclose(out_bf16, ref, rtol=5e-2, atol=5e-2)

    print("KERNEL_OK")
</pallas_src>

<mosaic_0001>
module attributes {stable_mosaic.version = 11 : i64} {
  func.func @kernel(%arg0: i32, %arg1: memref<8x3xi32, #tpu.memory_space<vmem>>, %arg2: memref<8x64xf32, #tpu.memory_space<vmem>>, %arg3: memref<32x32xf32, #tpu.memory_space<vmem>>, %arg4: memref<64x32xf32, #tpu.memory_space<vmem>>, %arg5: memref<1x32xf32, #tpu.memory_space<vmem>>, %arg6: memref<1x32xf32, #tpu.memory_space<vmem>>, %arg7: memref<8x64xf32, #tpu.memory_space<vmem>>) attributes {dimension_semantics = [#tpu.dimension_semantics<parallel>], iteration_bounds = array<i64: 2>, scalar_prefetch = 0 : i64, scratch_operands = 0 : i64, tpu.core_type = #tpu.core_type<tc>, window_params = [{transform_indices = @transform_0, window_bounds = array<i64: 8, 3>}, {transform_indices = @transform_1, window_bounds = array<i64: 8, 64>}, {pipeline_mode = #tpu.pipeline_mode<synchronous>, transform_indices = @transform_2, window_bounds = array<i64: 32, 32>}, {pipeline_mode = #tpu.pipeline_mode<synchronous>, transform_indices = @transform_3, window_bounds = array<i64: 64, 32>}, {pipeline_mode = #tpu.pipeline_mode<synchronous>, transform_indices = @transform_4, window_bounds = array<i64: 1, 32>}, {pipeline_mode = #tpu.pipeline_mode<synchronous>, transform_indices = @transform_5, window_bounds = array<i64: 1, 32>}, {transform_indices = @transform_6, window_bounds = array<i64: 8, 64>}]} {
    %c0 = arith.constant 0 : index
    %c0_0 = arith.constant 0 : index
    %0 = vector.load %arg3[%c0, %c0_0] : memref<32x32xf32, #tpu.memory_space<vmem>>, vector<32x32xf32>
    %c0_1 = arith.constant 0 : index
    %c0_2 = arith.constant 0 : index
    %1 = vector.load %arg1[%c0_1, %c0_2] : memref<8x3xi32, #tpu.memory_space<vmem>>, vector<8x3xi32>
    %2 = tpu.iota {dimensions = array<i32: 1>} : vector<8x32xi32>
    %3 = vector.extract_strided_slice %1 {offsets = [0, 0], sizes = [8, 1], strides = [1, 1]} : vector<8x3xi32> to vector<8x1xi32>
    %4 = vector.broadcast %3 : vector<8x1xi32> to vector<8x32xi32>
    %5 = arith.cmpi eq, %2, %4 : vector<8x32xi32>
    %6 = arith.extui %5 : vector<8x32xi1> to vector<8x32xi32>
    %7 = arith.sitofp %6 : vector<8x32xi32> to vector<8x32xf32>
    %8 = vector.extract_strided_slice %1 {offsets = [0, 1], sizes = [8, 1], strides = [1, 1]} : vector<8x3xi32> to vector<8x1xi32>
    %9 = vector.broadcast %8 : vector<8x1xi32> to vector<8x32xi32>
    %10 = arith.cmpi eq, %2, %9 : vector<8x32xi32>
    %11 = arith.extui %10 : vector<8x32xi1> to vector<8x32xi32>
    %12 = arith.sitofp %11 : vector<8x32xi32> to vector<8x32xf32>
    %13 = arith.addf %7, %12 : vector<8x32xf32>
    %14 = vector.extract_strided_slice %1 {offsets = [0, 2], sizes = [8, 1], strides = [1, 1]} : vector<8x3xi32> to vector<8x1xi32>
    %15 = vector.broadcast %14 : vector<8x1xi32> to vector<8x32xi32>
    %16 = arith.cmpi eq, %2, %15 : vector<8x32xi32>
    %17 = arith.extui %16 : vector<8x32xi1> to vector<8x32xi32>
    %18 = arith.sitofp %17 : vector<8x32xi32> to vector<8x32xf32>
    %19 = arith.addf %13, %18 : vector<8x32xf32>
    %cst = arith.constant dense<0.000000e+00> : vector<8x32xf32>
    %20 = tpu.matmul %19, %0, %cst {dimension_numbers = #tpu.dot_dimension_numbers<[1], [0], [0], [1], [0, 0, 1, 1], [], []>} : vector<8x32xf32>, vector<32x32xf32>, vector<8x32xf32> -> vector<8x32xf32>
    %c0_3 = arith.constant 0 : index
    %c0_4 = arith.constant 0 : index
    %21 = vector.load %arg2[%c0_3, %c0_4] : memref<8x64xf32, #tpu.memory_space<vmem>>, vector<8x64xf32>
    %c0_5 = arith.constant 0 : index
    %c0_6 = arith.constant 0 : index
    %22 = vector.load %arg4[%c0_5, %c0_6] : memref<64x32xf32, #tpu.memory_space<vmem>>, vector<64x32xf32>
    %cst_7 = arith.constant dense<0.000000e+00> : vector<8x32xf32>
    %23 = tpu.matmul %21, %22, %cst_7 {dimension_numbers = #tpu.dot_dimension_numbers<[1], [0], [0], [1], [0, 0, 1, 1], [], []>} : vector<8x64xf32>, vector<64x32xf32>, vector<8x32xf32> -> vector<8x32xf32>
    %cst_8 = arith.constant dense<0.000000e+00> : vector<8xf32>
    %24 = vector.multi_reduction <add>, %23, %cst_8 [1] : vector<8x32xf32> to vector<8xf32>
    %25 = vector.shape_cast %24 : vector<8xf32> to vector<8x1xf32>
    %cst_9 = arith.constant 3.125000e-02 : f32
    %26 = vector.broadcast %cst_9 : f32 to vector<8x1xf32>
    %27 = arith.mulf %25, %26 : vector<8x1xf32>
    %28 = vector.broadcast %27 : vector<8x1xf32> to vector<8x32xf32>
    %29 = arith.subf %23, %28 : vector<8x32xf32>
    %30 = arith.mulf %29, %29 : vector<8x32xf32>
    %cst_10 = arith.constant dense<0.000000e+00> : vector<8xf32>
    %31 = vector.multi_reduction <add>, %30, %cst_10 [1] : vector<8x32xf32> to vector<8xf32>
    %32 = vector.shape_cast %31 : vector<8xf32> to vector<8x1xf32>
    %cst_11 = arith.constant 3.125000e-02 : f32
    %33 = vector.broadcast %cst_11 : f32 to vector<8x1xf32>
    %34 = arith.mulf %32, %33 : vector<8x1xf32>
    %cst_12 = arith.constant 9.99999974E-6 : f32
    %35 = vector.broadcast %cst_12 : f32 to vector<8x1xf32>
    %36 = arith.addf %34, %35 : vector<8x1xf32>
    %37 = math.rsqrt %36 : vector<8x1xf32>
    %38 = vector.broadcast %37 : vector<8x1xf32> to vector<8x32xf32>
    %39 = arith.mulf %29, %38 : vector<8x32xf32>
    %c0_13 = arith.constant 0 : index
    %c0_14 = arith.constant 0 : index
    %40 = vector.load %arg5[%c0_13, %c0_14] : memref<1x32xf32, #tpu.memory_space<vmem>>, vector<1x32xf32>
    %41 = vector.broadcast %40 : vector<1x32xf32> to vector<8x32xf32>
    %42 = arith.mulf %39, %41 : vector<8x32xf32>
    %c0_15 = arith.constant 0 : index
    %c0_16 = arith.constant 0 : index
    %43 = vector.load %arg6[%c0_15, %c0_16] : memref<1x32xf32, #tpu.memory_space<vmem>>, vector<1x32xf32>
    %44 = vector.broadcast %43 : vector<1x32xf32> to vector<8x32xf32>
    %45 = arith.addf %42, %44 : vector<8x32xf32>
    %c0_17 = arith.constant 0 : index
    %c0_18 = arith.constant 0 : index
    %46 = vector.load %arg7[%c0_17, %c0_18] : memref<8x64xf32, #tpu.memory_space<vmem>>, vector<8x32xf32>
    tpu.vector_store %arg7[%c0_17, %c0_18], %20 {strides = array<i32>} : memref<8x64xf32, #tpu.memory_space<vmem>>, vector<8x32xf32>,
    %c0_19 = arith.constant 0 : index
    %c32 = arith.constant 32 : index
    %47 = vector.load %arg7[%c0_19, %c32] : memref<8x64xf32, #tpu.memory_space<vmem>>, vector<8x32xf32>
    tpu.vector_store %arg7[%c0_19, %c32], %45 {strides = array<i32>} : memref<8x64xf32, #tpu.memory_space<vmem>>, vector<8x32xf32>,
    return
  }
  func.func @transform_0(%arg0: i32) -> (i32, i32) {
    %c0_i32 = arith.constant 0 : i32
    %c0_i32_0 = arith.constant 0 : i32
    return %arg0, %c0_i32 : i32, i32
  }
  func.func @transform_1(%arg0: i32) -> (i32, i32) {
    %c0_i32 = arith.constant 0 : i32
    %c0_i32_0 = arith.constant 0 : i32
    return %arg0, %c0_i32 : i32, i32
  }
  func.func @transform_2(%arg0: i32) -> (i32, i32) {
    %c0_i32 = arith.constant 0 : i32
    %c0_i32_0 = arith.constant 0 : i32
    %c0_i32_1 = arith.constant 0 : i32
    return %c0_i32, %c0_i32_0 : i32, i32
  }
  func.func @transform_3(%arg0: i32) -> (i32, i32) {
    %c0_i32 = arith.constant 0 : i32
    %c0_i32_0 = arith.constant 0 : i32
    %c0_i32_1 = arith.constant 0 : i32
    return %c0_i32, %c0_i32_0 : i32, i32
  }
  func.func @transform_4(%arg0: i32) -> (i32, i32) {
    %c0_i32 = arith.constant 0 : i32
    %c0_i32_0 = arith.constant 0 : i32
    %c0_i32_1 = arith.constant 0 : i32
    return %c0_i32, %c0_i32_0 : i32, i32
  }
  func.func @transform_5(%arg0: i32) -> (i32, i32) {
    %c0_i32 = arith.constant 0 : i32
    %c0_i32_0 = arith.constant 0 : i32
    %c0_i32_1 = arith.constant 0 : i32
    return %c0_i32, %c0_i32_0 : i32, i32
  }
  func.func @transform_6(%arg0: i32) -> (i32, i32) {
    %c0_i32 = arith.constant 0 : i32
    %c0_i32_0 = arith.constant 0 : i32
    return %arg0, %c0_i32 : i32, i32
  }
}

</mosaic_0001>

<llo_original>
// kernel: tpu_custom_call.1
$region0: #{tpu_custom_call.1}
  #allocation0 [shape = 'u32[]', space=smem, size = 0x4, offset = 0x4, fixed_abs, tag = 'smem constant byte address 0x4 - core index']
  #allocation1 [shape = 'u32[144,128]{1,0:T(1,128)}', space=vmem, size = 0x12000, scoped, tag = 'internal scratch']
  %s0 = inlined_call_operand.vmem [shape: s32[16,3], index: 0, kind: input, shape index: {}]
  %s1 = inlined_call_operand.vmem [shape: f32[16,64], index: 1, kind: input, shape index: {}]
  %s2 = inlined_call_operand.vmem [shape: f32[32,32], index: 2, kind: input, shape index: {}]
  %s3 = inlined_call_operand.vmem [shape: f32[64,32], index: 3, kind: input, shape index: {}]
  %s4 = inlined_call_operand.vmem [shape: f32[1,32], index: 4, kind: input, shape index: {}]
  %s5 = inlined_call_operand.vmem [shape: f32[1,32], index: 5, kind: input, shape index: {}]
  %s6 = inlined_call_operand.hbm [shape: f32[16,64], index: 6, kind: output, shape index: {}]
  %s7 = sld [smem:[#allocation0]]
  $region57: #{tpu_custom_call.1} parent=0
    _
  %s9 = ssub.s32 1, %s7
  %s10 = scalar_select 0, %s9, %s7
  $region1: #{tpu_custom_call.1} parent=0
    #allocation2 [shape = 'u8[8192]{0}', space=vmem, size = 0x2000, scoped, tag = 'output window, operand 0']
    #allocation3 [shape = 's32[2]{0}', space=sflag, size = 0x8, scoped, tag = 'scoped memory for tpu_custom_call.1']
    %11 = vsyncpa [#allocation3], 0
    %s12 = scalar_lea.sflag [#allocation3], 1
    %13 = vsyncpa %s12, 0
    loop: start=0, step=1, limit=4
    $region2: #{tpu_custom_call.1} parent=1 // loop_pre_header
      _
    $region3: #{tpu_custom_call.1} parent=1 // loop_header
      %s15 = sphi 0, %s19
      %p16 = scmp.ge.s32.totalorder %s15, 4
      %s25 = sphi 0, %s27
      %s28 = sphi 0, %s25
      %s29 = sphi 0, %s28
      %s45 = sphi 0, %s29
      %s51 = sphi 0, %s53
      %s54 = sphi 0, %s51
      %s55 = sphi 0, %s54
      %s71 = sphi 0, %s55
      %s75 = sphi 0, %s75
      %s77 = sphi 0, %s75
      %s78 = sphi 0, %s77
      %s92 = sphi 0, %s78
      %s96 = sphi 0, %s96
      %s98 = sphi 0, %s96
      %s99 = sphi 0, %s98
      %s113 = sphi 0, %s99
      %s117 = sphi 0, %s117
      %s119 = sphi 0, %s117
      %s120 = sphi 0, %s119
      %s134 = sphi 0, %s120
      %s138 = sphi 0, %s138
      %s140 = sphi 0, %s138
      %s141 = sphi 0, %s140
      %s155 = sphi 0, %s141
      %s161 = sphi 0, %s163
      %s164 = sphi 0, %s161
      %s165 = sphi 0, %s164
      %s181 = sphi 0, %s165
    $region4: #{tpu_custom_call.1} parent=1 // loop_header_branch
      %18 = sbr.rel (%p16) target = $region8
    $region5: #{tpu_custom_call.1} parent=1 // loop_body
      %s20 = ssub.s32 %s15, 1
      %s21 = ssub.s32 %s15, 2
      %s22 = sadd.s32 %s15, 1
      %s23 = ssub.s32 %s15, %s22
      %p24 = scmp.eq.s32.totalorder %s23, 0
      %s26 = sadd.s32 %s25, 1
      %s27 = scalar_select %p24, %s25, %s26
      %p30 = pneg %p24
      %p31 = scmp.eq.s32.totalorder %s15, 1
      %p32 = por %p30, %p31
      %p33 = scmp.ne.s32.totalorder %s25, %s28
      %p34 = scmp.eq.s32.totalorder %s15, 0
      %p35 = por %p33, %p34
      %p36 = scmp.ne.s32.totalorder %s25, %s28
      %p37 = scmp.eq.s32.totalorder %s20, 1
      %p38 = por %p36, %p37
      %p39 = scmp.ne.s32.totalorder %s28, %s29
      %p40 = scmp.eq.s32.totalorder %s20, 0
      %p41 = por %p39, %p40
      %p42 = scmp.ne.s32.totalorder %s28, %s29
      %p43 = scmp.eq.s32.totalorder %s21, 1
      %p44 = por %p42, %p43
      %p46 = scmp.ne.s32.totalorder %s29, %s45
      %p47 = scmp.eq.s32.totalorder %s21, 0
      %p48 = por %p46, %p47
      %s49 = ssub.s32 %s15, %s22
      %p50 = scmp.eq.s32.totalorder %s49, 0
      %s52 = sadd.s32 %s51, 1
      %s53 = scalar_select %p50, %s51, %s52
      %p56 = pneg %p50
      %p57 = scmp.eq.s32.totalorder %s15, 1
      %p58 = por %p56, %p57
      %p59 = scmp.ne.s32.totalorder %s51, %s54
      %p60 = scmp.eq.s32.totalorder %s15, 0
      %p61 = por %p59, %p60
      %p62 = scmp.ne.s32.totalorder %s51, %s54
      %p63 = scmp.eq.s32.totalorder %s20, 1
      %p64 = por %p62, %p63
      %p65 = scmp.ne.s32.totalorder %s54, %s55
      %p66 = scmp.eq.s32.totalorder %s20, 0
      %p67 = por %p65, %p66
      %p68 = scmp.ne.s32.totalorder %s54, %s55
      %p69 = scmp.eq.s32.totalorder %s21, 1
      %p70 = por %p68, %p69
      %p72 = scmp.ne.s32.totalorder %s55, %s71
      %p73 = scmp.eq.s32.totalorder %s21, 0
      %p74 = por %p72, %p73
      %s76 = sadd.s32 %s75, 1
      %p79 = scmp.eq.s32.totalorder %s15, 1
      %p80 = scmp.ne.s32.totalorder %s75, %s77
      %p81 = scmp.eq.s32.totalorder %s15, 0
      %p82 = por %p80, %p81
      %p83 = scmp.ne.s32.totalorder %s75, %s77
      %p84 = scmp.eq.s32.totalorder %s20, 1
      %p85 = por %p83, %p84
      %p86 = scmp.ne.s32.totalorder %s77, %s78
      %p87 = scmp.eq.s32.totalorder %s20, 0
      %p88 = por %p86, %p87
      %p89 = scmp.ne.s32.totalorder %s77, %s78
      %p90 = scmp.eq.s32.totalorder %s21, 1
      %p91 = por %p89, %p90
      %p93 = scmp.ne.s32.totalorder %s78, %s92
      %p94 = scmp.eq.s32.totalorder %s21, 0
      %p95 = por %p93, %p94
      %s97 = sadd.s32 %s96, 1
      %p100 = scmp.eq.s32.totalorder %s15, 1
      %p101 = scmp.ne.s32.totalorder %s96, %s98
      %p102 = scmp.eq.s32.totalorder %s15, 0
      %p103 = por %p101, %p102
      %p104 = scmp.ne.s32.totalorder %s96, %s98
      %p105 = scmp.eq.s32.totalorder %s20, 1
      %p106 = por %p104, %p105
      %p107 = scmp.ne.s32.totalorder %s98, %s99
      %p108 = scmp.eq.s32.totalorder %s20, 0
      %p109 = por %p107, %p108
      %p110 = scmp.ne.s32.totalorder %s98, %s99
      %p111 = scmp.eq.s32.totalorder %s21, 1
      %p112 = por %p110, %p111
      %p114 = scmp.ne.s32.totalorder %s99, %s113
      %p115 = scmp.eq.s32.totalorder %s21, 0
      %p116 = por %p114, %p115
      %s118 = sadd.s32 %s117, 1
      %p121 = scmp.eq.s32.totalorder %s15, 1
      %p122 = scmp.ne.s32.totalorder %s117, %s119
      %p123 = scmp.eq.s32.totalorder %s15, 0
      %p124 = por %p122, %p123
      %p125 = scmp.ne.s32.totalorder %s117, %s119
      %p126 = scmp.eq.s32.totalorder %s20, 1
      %p127 = por %p125, %p126
      %p128 = scmp.ne.s32.totalorder %s119, %s120
      %p129 = scmp.eq.s32.totalorder %s20, 0
      %p130 = por %p128, %p129
      %p131 = scmp.ne.s32.totalorder %s119, %s120
      %p132 = scmp.eq.s32.totalorder %s21, 1
      %p133 = por %p131, %p132
      %p135 = scmp.ne.s32.totalorder %s120, %s134
      %p136 = scmp.eq.s32.totalorder %s21, 0
      %p137 = por %p135, %p136
      %s139 = sadd.s32 %s138, 1
      %p142 = scmp.eq.s32.totalorder %s15, 1
      %p143 = scmp.ne.s32.totalorder %s138, %s140
      %p144 = scmp.eq.s32.totalorder %s15, 0
      %p145 = por %p143, %p144
      %p146 = scmp.ne.s32.totalorder %s138, %s140
      %p147 = scmp.eq.s32.totalorder %s20, 1
      %p148 = por %p146, %p147
      %p149 = scmp.ne.s32.totalorder %s140, %s141
      %p150 = scmp.eq.s32.totalorder %s20, 0
      %p151 = por %p149, %p150
      %p152 = scmp.ne.s32.totalorder %s140, %s141
      %p153 = scmp.eq.s32.totalorder %s21, 1
      %p154 = por %p152, %p153
      %p156 = scmp.ne.s32.totalorder %s141, %s155
      %p157 = scmp.eq.s32.totalorder %s21, 0
      %p158 = por %p156, %p157
      %s159 = ssub.s32 %s15, %s22
      %p160 = scmp.eq.s32.totalorder %s159, 0
      %s162 = sadd.s32 %s161, 1
      %s163 = scalar_select %p160, %s161, %s162
      %p166 = pneg %p160
      %p167 = scmp.eq.s32.totalorder %s15, 1
      %p168 = por %p166, %p167
      %p169 = scmp.ne.s32.totalorder %s161, %s164
      %p170 = scmp.eq.s32.totalorder %s15, 0
      %p171 = por %p169, %p170
      %p172 = scmp.ne.s32.totalorder %s161, %s164
      %p173 = scmp.eq.s32.totalorder %s20, 1
      %p174 = por %p172, %p173
      %p175 = scmp.ne.s32.totalorder %s164, %s165
      %p176 = scmp.eq.s32.totalorder %s20, 0
      %p177 = por %p175, %p176
      %p178 = scmp.ne.s32.totalorder %s164, %s165
      %p179 = scmp.eq.s32.totalorder %s21, 1
      %p180 = por %p178, %p179
      %p182 = scmp.ne.s32.totalorder %s165, %s181
      %p183 = scmp.eq.s32.totalorder %s21, 0
      %p184 = por %p182, %p183
      %p185 = scmp.le.s32.totalorder 1, %s15
      %p186 = scmp.lt.s32.totalorder %s15, 3
      %p187 = pnand %p185, %p186
      %p188 = pneg %p187
      // Predicated region
      $region9: #{tpu_custom_call.1} parent=5 // pred_check
        _
      $region10: #{tpu_custom_call.1} parent=5 // pred_check_branch
        %190 = sbr.rel (%p187) target = $region12
      $region11: #{tpu_custom_call.1} parent=5 // pred_region
        %s191 = ssub.s32 %s15, 1
        // Predicated region
        $region13: #{tpu_custom_call.1} parent=11 // pred_check
          %p192 = pneg %p88
        $region14: #{tpu_custom_call.1} parent=11 // pred_check_branch
          %194 = sbr.rel (%p192) target = $region16
        $region15: #{tpu_custom_call.1} parent=11 // pred_region
          _
        $region16: #{tpu_custom_call.1} parent=11 // pred_fallthru
          _
        // Predicated region
        $region17: #{tpu_custom_call.1} parent=11 // pred_check
          %p195 = pneg %p109
        $region18: #{tpu_custom_call.1} parent=11 // pred_check_branch
          %197 = sbr.rel (%p195) target = $region20
        $region19: #{tpu_custom_call.1} parent=11 // pred_region
          _
        $region20: #{tpu_custom_call.1} parent=11 // pred_fallthru
          _
        // Predicated region
        $region21: #{tpu_custom_call.1} parent=11 // pred_check
          %p198 = pneg %p130
        $region22: #{tpu_custom_call.1} parent=11 // pred_check_branch
          %200 = sbr.rel (%p198) target = $region24
        $region23: #{tpu_custom_call.1} parent=11 // pred_region
          _
        $region24: #{tpu_custom_call.1} parent=11 // pred_fallthru
          _
        // Predicated region
        $region25: #{tpu_custom_call.1} parent=11 // pred_check
          %p201 = pneg %p151
        $region26: #{tpu_custom_call.1} parent=11 // pred_check_branch
          %203 = sbr.rel (%p201) target = $region28
        $region27: #{tpu_custom_call.1} parent=11 // pred_region
          _
        $region28: #{tpu_custom_call.1} parent=11 // pred_fallthru
          _
      $region12: #{tpu_custom_call.1} parent=5 // pred_fallthru
        _
      %p204 = scmp.lt.s32.totalorder %s15, 2
      // Predicated region
      $region29: #{tpu_custom_call.1} parent=5 // pred_check
        %p205 = pneg %p204
      $region30: #{tpu_custom_call.1} parent=5 // pred_check_branch
        %207 = sbr.rel (%p205) target = $region32
      $region31: #{tpu_custom_call.1} parent=5 // pred_region
        // Predicated region
        $region33: #{tpu_custom_call.1} parent=31 // pred_check
          %p208 = pneg %p35
        $region34: #{tpu_custom_call.1} parent=31 // pred_check_branch
          %210 = sbr.rel (%p208) target = $region36
        $region35: #{tpu_custom_call.1} parent=31 // pred_region
          %p211 = scmp.lt.s32.totalorder %s15, 1
          %s212 = scalar_select %p211, %s15, 1
          %s213 = smul.addr %s212, 8
          %s214 = scalar_lea.vmem %s0, %s213
        $region36: #{tpu_custom_call.1} parent=31 // pred_fallthru
          _
        // Predicated region
        $region37: #{tpu_custom_call.1} parent=31 // pred_check
          %p215 = pneg %p61
        $region38: #{tpu_custom_call.1} parent=31 // pred_check_branch
          %217 = sbr.rel (%p215) target = $region40
        $region39: #{tpu_custom_call.1} parent=31 // pred_region
          %p218 = scmp.lt.s32.totalorder %s15, 1
          %s219 = scalar_select %p218, %s15, 1
          %s220 = smul.addr %s219, 8
          %s221 = scalar_lea.vmem %s1, %s220
        $region40: #{tpu_custom_call.1} parent=31 // pred_fallthru
          _
      $region32: #{tpu_custom_call.1} parent=5 // pred_fallthru
        _
      %p222 = scmp.le.s32.totalorder 1, %s15
      %p223 = scmp.lt.s32.totalorder %s15, 3
      %p224 = pnand %p222, %p223
      %p225 = pneg %p224
      // Predicated region
      $region41: #{tpu_custom_call.1} parent=5 // pred_check
        _
      $region42: #{tpu_custom_call.1} parent=5 // pred_check_branch
        %227 = sbr.rel (%p224) target = $region44
      $region43: #{tpu_custom_call.1} parent=5 // pred_region
        %s228 = ssub.s32 %s15, 1
        %p229 = scmp.lt.s32.totalorder %s20, 1
        %s230 = scalar_select %p229, %s20, 1
        %s231 = smul.addr %s230, 8
        %s232 = scalar_lea.vmem %s0, %s231
        %p233 = pneg %p41
        %p234 = pneg %p38
        %p235 = scmp.lt.s32.totalorder %s20, 1
        %s236 = scalar_select %p235, %s20, 1
        %s237 = smul.addr %s236, 8
        %s238 = scalar_lea.vmem %s1, %s237
        %p239 = pneg %p67
        %p240 = pneg %p64
        %p241 = pneg %p88
        %p242 = pneg %p85
        %p243 = pneg %p109
        %p244 = pneg %p106
        %p245 = pneg %p130
        %p246 = pneg %p127
        %p247 = pneg %p151
        %p248 = pneg %p148
        %p249 = pneg %p177
        %p250 = pneg %p174
        %s251 = sand.u32 %s164, 1
        %s252 = scalar_lea.sflag [#allocation3], %s251
        %s253 = sand.u32 %s164, 1
        %s254 = smul.addr %s253, 8
        %s255 = scalar_lea.vmem [#allocation2], %s254
        %p256 = scmp.lt.s32.totalorder %s20, 1
        %s257 = scalar_select %p256, %s20, 1
        %s258 = smul.addr %s257, 8
        %s259 = scalar_lea.vmem %s0, %s258
        %p260 = scmp.lt.s32.totalorder %s20, 1
        %s261 = scalar_select %p260, %s20, 1
        %s262 = smul.addr %s261, 8
        %s263 = scalar_lea.vmem %s1, %s262
        %v264 = vld [vmem:[%s2] sm:$0xff]
        %v265 = vld [vmem:[%s2 + $0x8] sm:$0xff]
        %v266 = vld [vmem:[%s2 + $0x10] sm:$0xff]
        %v267 = vld [vmem:[%s2 + $0x18] sm:$0xff]
        %v268 = vld [vmem:[%s259] sm:$0xff]
        %v269 = vlaneseq
        %v270 = vand.u32 %v269, 127
        %271 = vset.pattern.permute.xlu0 0
        %272 = vperm.xlu0 %271, %v268
        %v273 = vpop.permute.xlu0 %272
        %vm274 = vcmp.eq.s32.totalorder %v270, %v273
        %v275 = vsel %vm274, 1, 0
        %v276 = vcvt.s32.f32 %v275
        %277 = vset.pattern.permute.xlu0 1
        %278 = vperm.xlu0 %277, %v268
        %v279 = vpop.permute.xlu0 %278
        %vm280 = vcmp.eq.s32.totalorder %v270, %v279
        %v281 = vsel %vm280, 1, 0
        %v282 = vcvt.s32.f32 %v281
        %v283 = vadd.f32 %v276, %v282
        %284 = vset.pattern.permute.xlu0 2
        %285 = vperm.xlu0 %284, %v268
        %v286 = vpop.permute.xlu0 %285
        %vm287 = vcmp.eq.s32.totalorder %v270, %v286
        %v288 = vsel %vm287, 1, 0
        %v289 = vcvt.s32.f32 %v288
        %v290 = vadd.f32 %v283, %v289
        %vm291 = vcmask 261120
        %v293 = vsel %vm291, %v290, 0
        %295 = vmatprep.subr.mxu0 0.0
        %296 = vmatpush1.msra.mxu0 0.0
        %297 = vmatprep.subr.mxu0 0.0
        %298 = vmatpush1.msra.mxu0 0.0
        %299 = vmatprep.subr.mxu0 0.0
        %300 = vmatpush1.msra.mxu0 0.0
        %301 = vmatprep.subr.mxu0 0.0
        %302 = vmatpush1.msra.mxu0 0.0
        %303 = vmatprep.subr.mxu0 0.0
        %304 = vmatpush1.msra.mxu0 0.0
        %305 = vmatprep.subr.mxu0 0.0
        %306 = vmatpush1.msra.mxu0 0.0
        %307 = vmatprep.subr.mxu0 0.0
        %308 = vmatpush1.msra.mxu0 0.0
        %309 = vmatprep.subr.mxu0 0.0
        %310 = vmatpush1.msra.mxu0 0.0
        %311 = vmatprep.subr.mxu0 0.0
        %312 = vmatpush1.msra.mxu0 0.0
        %313 = vmatprep.subr.mxu0 0.0
        %314 = vmatpush1.msra.mxu0 0.0
        %315 = vmatprep.subr.mxu0 0.0
        %316 = vmatpush1.msra.mxu0 0.0
        %317 = vmatprep.subr.mxu0 0.0
        %318 = vmatpush1.msra.mxu0 0.0
        %319 = vmatprep.subr.mxu0 0.0
        %320 = vmatpush1.msra.mxu0 %v267
        %321 = vmatprep.subr.mxu0 0.0
        %322 = vmatpush1.msra.mxu0 %v266
        %323 = vmatprep.subr.mxu0 0.0
        %324 = vmatpush1.msra.mxu0 %v265
        %325 = vmatprep.subr.mxu0 0.0
        %326 = vmatpush1.msra.mxu0 %v264
        %327 = vmatprep.subr.mxu0 0.0
        %328 = vmatpush2.msra.mxu0 0.0
        %329 = vmatprep.subr.mxu0 0.0
        %330 = vmatpush2.msra.mxu0 0.0
        %331 = vmatprep.subr.mxu0 0.0
        %332 = vmatpush2.msra.mxu0 0.0
        %333 = vmatprep.subr.mxu0 0.0
        %334 = vmatpush2.msra.mxu0 0.0
        %335 = vmatprep.subr.mxu0 0.0
        %336 = vmatpush2.msra.mxu0 0.0
        %337 = vmatprep.subr.mxu0 0.0
        %338 = vmatpush2.msra.mxu0 0.0
        %339 = vmatprep.subr.mxu0 0.0
        %340 = vmatpush2.msra.mxu0 0.0
        %341 = vmatprep.subr.mxu0 0.0
        %342 = vmatpush2.msra.mxu0 0.0
        %343 = vmatprep.subr.mxu0 0.0
        %344 = vmatpush2.msra.mxu0 0.0
        %345 = vmatprep.subr.mxu0 0.0
        %346 = vmatpush2.msra.mxu0 0.0
        %347 = vmatprep.subr.mxu0 0.0
        %348 = vmatpush2.msra.mxu0 0.0
        %349 = vmatprep.subr.mxu0 0.0
        %350 = vmatpush2.msra.mxu0 0.0
        %351 = vmatprep.subr.mxu0 0.0
        %352 = vmatpush2.msra.mxu0 0.0
        %353 = vmatprep.subr.mxu0 0.0
        %354 = vmatpush2.msra.mxu0 0.0
        %355 = vmatprep.subr.mxu0 0.0
        %356 = vmatpush2.msra.mxu0 0.0
        %357 = vmatprep.subr.mxu0 0.0
        %358 = vmatpush2.msra.mxu0 0.0
        %359 = vmatprep.mubr.f32.mxu0 0.0
        %360 = vmatmul.mubr.f32.gmra.mxu0 %v293
        %v361 = vpop.f32.mrf.mxu0
        %v362 = vadd.f32 0.0, %v361
        %v363 = vpop.f32.mrf.mxu0
        %364 = vdwg.mxu0
        %v365 = vld [vmem:[%s263] sm:$0xff]
        %v366 = vld [vmem:[%s3] sm:$0xff]
        %v367 = vld [vmem:[%s3 + $0x8] sm:$0xff]
        %v368 = vld [vmem:[%s3 + $0x10] sm:$0xff]
        %v369 = vld [vmem:[%s3 + $0x18] sm:$0xff]
        %v370 = vld [vmem:[%s3 + $0x20] sm:$0xff]
        %v371 = vld [vmem:[%s3 + $0x28] sm:$0xff]
        %v372 = vld [vmem:[%s3 + $0x30] sm:$0xff]
        %v373 = vld [vmem:[%s3 + $0x38] sm:$0xff]
        %vm374 = vcmask 523264
        %v376 = vsel %vm374, %v365, 0
        %378 = vmatprep.subr.mxu0 0.0
        %379 = vmatpush1.msra.mxu0 0.0
        %380 = vmatprep.subr.mxu0 0.0
        %381 = vmatpush1.msra.mxu0 0.0
        %382 = vmatprep.subr.mxu0 0.0
        %383 = vmatpush1.msra.mxu0 0.0
        %384 = vmatprep.subr.mxu0 0.0
        %385 = vmatpush1.msra.mxu0 0.0
        %386 = vmatprep.subr.mxu0 0.0
        %387 = vmatpush1.msra.mxu0 0.0
        %388 = vmatprep.subr.mxu0 0.0
        %389 = vmatpush1.msra.mxu0 0.0
        %390 = vmatprep.subr.mxu0 0.0
        %391 = vmatpush1.msra.mxu0 0.0
        %392 = vmatprep.subr.mxu0 0.0
        %393 = vmatpush1.msra.mxu0 0.0
        %394 = vmatprep.subr.mxu0 0.0
        %395 = vmatpush1.msra.mxu0 %v373
        %396 = vmatprep.subr.mxu0 0.0
        %397 = vmatpush1.msra.mxu0 %v372
        %398 = vmatprep.subr.mxu0 0.0
        %399 = vmatpush1.msra.mxu0 %v371
        %400 = vmatprep.subr.mxu0 0.0
        %401 = vmatpush1.msra.mxu0 %v370
        %402 = vmatprep.subr.mxu0 0.0
        %403 = vmatpush1.msra.mxu0 %v369
        %404 = vmatprep.subr.mxu0 0.0
        %405 = vmatpush1.msra.mxu0 %v368
        %406 = vmatprep.subr.mxu0 0.0
        %407 = vmatpush1.msra.mxu0 %v367
        %408 = vmatprep.subr.mxu0 0.0
        %409 = vmatpush1.msra.mxu0 %v366
        %410 = vmatprep.subr.mxu0 0.0
        %411 = vmatpush2.msra.mxu0 0.0
        %412 = vmatprep.subr.mxu0 0.0
        %413 = vmatpush2.msra.mxu0 0.0
        %414 = vmatprep.subr.mxu0 0.0
        %415 = vmatpush2.msra.mxu0 0.0
        %416 = vmatprep.subr.mxu0 0.0
        %417 = vmatpush2.msra.mxu0 0.0
        %418 = vmatprep.subr.mxu0 0.0
        %419 = vmatpush2.msra.mxu0 0.0
        %420 = vmatprep.subr.mxu0 0.0
        %421 = vmatpush2.msra.mxu0 0.0
        %422 = vmatprep.subr.mxu0 0.0
        %423 = vmatpush2.msra.mxu0 0.0
        %424 = vmatprep.subr.mxu0 0.0
        %425 = vmatpush2.msra.mxu0 0.0
        %426 = vmatprep.subr.mxu0 0.0
        %427 = vmatpush2.msra.mxu0 0.0
        %428 = vmatprep.subr.mxu0 0.0
        %429 = vmatpush2.msra.mxu0 0.0
        %430 = vmatprep.subr.mxu0 0.0
        %431 = vmatpush2.msra.mxu0 0.0
        %432 = vmatprep.subr.mxu0 0.0
        %433 = vmatpush2.msra.mxu0 0.0
        %434 = vmatprep.subr.mxu0 0.0
        %435 = vmatpush2.msra.mxu0 0.0
        %436 = vmatprep.subr.mxu0 0.0
        %437 = vmatpush2.msra.mxu0 0.0
        %438 = vmatprep.subr.mxu0 0.0
        %439 = vmatpush2.msra.mxu0 0.0
        %440 = vmatprep.subr.mxu0 0.0
        %441 = vmatpush2.msra.mxu0 0.0
        %442 = vmatprep.mubr.f32.mxu0 0.0
        %443 = vmatmul.mubr.f32.gmra.mxu0 %v376
        %v444 = vpop.f32.mrf.mxu0
        %v445 = vadd.f32 0.0, %v444
        %v446 = vpop.f32.mrf.mxu0
        %447 = vdwg.mxu0
        %v448 = vsel %vm291, %v445, 0.0
        %449 = vadd.xlane.f32.xlu0 %v448
        %v450 = vpop.xlane.xlu0 %449
        %v451 = vmul.f32 %v450, 0.03125
        %v452 = vsub.f32 %v445, %v451
        %v453 = vmul.f32 %v452, %v452
        %v454 = vsel %vm291, %v453, 0.0
        %455 = vadd.xlane.f32.xlu0 %v454
        %v456 = vpop.xlane.xlu0 %455
        %v457 = vmul.f32 %v456, 0.03125
        %v458 = vadd.f32 %v457, 1e-05
        %v459 = vrsqrt.pop %v458
        %v460 = vmul.f32 %v452, %v459
        %v461 = vld [vmem:[%s4] sm:$0x1]
        %v463 = vlaneseq
        %v464 = vshrl.u32 %v463, 7
        %v465 = vsub.s32 0, %v464
        %v466 = vrot.slane %v461, %v465
        %v468 = vmul.f32 %v460, %v466
        %v469 = vld [vmem:[%s5] sm:$0x1]
        %v471 = vlaneseq
        %v472 = vshrl.u32 %v471, 7
        %v473 = vsub.s32 0, %v472
        %v474 = vrot.slane %v469, %v473
        %v476 = vadd.f32 %v468, %v474
        %477 = vst.msk [vmem:[%s255] sm:$0xff] %vm291, %v362
        %479 = vrot.lane.b32.xlu0 %v476, 32
        %v480 = vpop.permute.xlu0 %479
        %vm482 = vcmask 523520
        %483 = vst.msk [vmem:[%s255] sm:$0xff] %vm482, %v480
        %s484 = sand.u32 %s164, 1
        %s485 = scalar_lea.sflag [#allocation3], %s484
        %s486 = sand.u32 %s164, 1
        %s487 = smul.addr %s486, 8
        %s488 = scalar_lea.vmem [#allocation2], %s487
        // Predicated region
        $region45: #{tpu_custom_call.1} parent=43 // pred_check
          %p489 = pneg %p174
        $region46: #{tpu_custom_call.1} parent=43 // pred_check_branch
          %491 = sbr.rel (%p489) target = $region48
        $region47: #{tpu_custom_call.1} parent=43 // pred_region
          %s493 = ssub.s32 128, 128
          %494 = vsyncadd %s485, %s493
          %s495 = smul.addr %s20, 128
          %s496 = scalar_lea.hbm %s6, %s495
          %s498 = sshll.u32 %s488, 4
          %s499 = int_to_ptr.vmem [resolvable:$true] %s498
          %501 = dma.vmem_to_hbm [thread:$0]  %s499, 128, %s496, %s485
        $region48: #{tpu_custom_call.1} parent=43 // pred_fallthru
          _
      $region44: #{tpu_custom_call.1} parent=5 // pred_fallthru
        _
      %p502 = scmp.le.s32.totalorder 2, %s15
      // Predicated region
      $region49: #{tpu_custom_call.1} parent=5 // pred_check
        %p503 = pneg %p502
      $region50: #{tpu_custom_call.1} parent=5 // pred_check_branch
        %505 = sbr.rel (%p503) target = $region52
      $region51: #{tpu_custom_call.1} parent=5 // pred_region
        %s506 = ssub.s32 %s15, 2
        // Predicated region
        $region53: #{tpu_custom_call.1} parent=51 // pred_check
          %p507 = pneg %p180
        $region54: #{tpu_custom_call.1} parent=51 // pred_check_branch
          %509 = sbr.rel (%p507) target = $region56
        $region55: #{tpu_custom_call.1} parent=51 // pred_region
          %s510 = sand.u32 %s165, 1
          %s511 = scalar_lea.sflag [#allocation3], %s510
          %s512 = sand.u32 %s165, 1
          %s513 = smul.addr %s512, 8
          %s514 = scalar_lea.vmem [#allocation2], %s513
          %515 = dma.done %s511, 128
        $region56: #{tpu_custom_call.1} parent=51 // pred_fallthru
          _
      $region52: #{tpu_custom_call.1} parent=5 // pred_fallthru
        _
    $region6: #{tpu_custom_call.1} parent=1 // loop_footer
      %s19 = sadd.s32 1, %s15
    $region7: #{tpu_custom_call.1} parent=1 // loop_footer_branch
      %14 = sbr.rel target = $region3
    $region8: #{tpu_custom_call.1} parent=1 // loop_exit
      _
    %516 = vsyncpa [#allocation3], 1
    %s517 = scalar_lea.sflag [#allocation3], 1
    %518 = vsyncpa %s517, 1

</llo_original>
